<compile_context>
chip_gen: v5e
topology: v5e:2x2
jax: 0.10.0
libtpu: 0.0.40
codegen_flags: <defaults>
</compile_context>

<pallas_src>
import jax
import jax.numpy as jnp
from jax.experimental import pallas as pl
from jax.experimental.pallas import tpu as pltpu


def _mlp_probe_kernel(x_ref, w1_ref, b1_ref, w2t_ref, b2_ref, o_ref, acc_ref):
    """One (batch-tile i, feature-chunk k) grid step.

    x_ref:   [TB, TK]  (bf16 default)  streamed over i and k
    w1_ref:  [TK, Hp]  (bf16 default)  streamed over k
    b1_ref:  [1, Hp]   f32             resident
    w2t_ref: [8, Hp]   (row 0 real)    resident
    b2_ref:  [1]       f32 SMEM scalar resident
    o_ref:   [1, TB]   f32             lane-dense, written once per i
    acc_ref: [TB, Hp]  f32 VMEM scratch, accumulates linear1 over k
    """
    k = pl.program_id(1)

    @pl.when(k == 0)
    def _():
        acc_ref[...] = jnp.zeros_like(acc_ref)

    # Linear1 partial product on the MXU, f32 accumulation in VMEM scratch.
    acc_ref[...] += jnp.dot(x_ref[...], w1_ref[...],
                            preferred_element_type=jnp.float32)

    @pl.when(k == pl.num_programs(1) - 1)
    def _():
        # Bias + ReLU epilogue in f32 on the VPU.
        h = jnp.maximum(acc_ref[...] + b1_ref[...], 0.0)          # [TB, Hp] f32
        # Cast to the weight dtype (bf16 by default) so any materialized
        # h-transpose for the A.B^T GEMM below is packed / half-sized.
        h = h.astype(w2t_ref.dtype)
        # Linear2 as a transposed GEMM: [8, Hp] . [TB, Hp]^T -> [8, TB].
        # Only row 0 of w2t is real; the batch ends up on the lane axis.
        o = jax.lax.dot_general(
            w2t_ref[...], h,
            dimension_numbers=(((1,), (1,)), ((), ())),
            preferred_element_type=jnp.float32)                   # [8, TB]
        o = o[0:1, :] + b2_ref[0]                                 # [1, TB]
        # Sigmoid rides the EUP; lane-dense (1, TB) unmasked store.
        o_ref[...] = jax.nn.sigmoid(o).astype(o_ref.dtype)


def mlp_probe_forward(x, w1, b1, w2, b2, *, use_bf16=True):
    """x: [B, d]; w1: [d, H]; b1: [H]; w2: [H, 1]; b2: [1] -> [B, 1]."""
    B, d = x.shape
    H = w1.shape[1]
    Hp = 128 * pl.cdiv(H, 128)          # pad hidden 100 -> 128 (full lane vreg)

    f32 = jnp.float32
    cdt = jnp.bfloat16 if use_bf16 else f32
    isz = 2 if use_bf16 else 4

    # ---- feature (K) tiling: bounds VMEM for any d ----
    max_tk = 2048                        # multiple of 128
    if d <= max_tk:
        TK, dp = d, d
    else:
        TK = max_tk
        dp = TK * pl.cdiv(d, TK)         # zero-pad d so every K block is full

    # ---- batch tiling: output lanes carry the batch -> TB multiple of 128 ----
    target_x_tile_bytes = 4 << 20        # ~4 MiB streamed x tile (itemsize-aware)
    TB = target_x_tile_bytes // (TK * isz)
    TB = max(128, min(8192, (TB // 128) * 128))
    rows128 = 128 * pl.cdiv(B, 128)
    TB = min(TB, rows128)
    # Guarantee several batch tiles when the batch allows it (DMA/compute
    # overlap + both v7x TensorCores on the "parallel" axis).
    desired_tiles = 4
    tiles_cap = max(128, ((rows128 // desired_tiles) // 128) * 128)
    TB = min(TB, tiles_cap)
    Bp = TB * pl.cdiv(B, TB)

    # ---- one-time parameter / input prep (plain JAX) ----
    w1p = jnp.zeros((dp, Hp), f32).at[:d, :H].set(w1.astype(f32)).astype(cdt)
    b1p = jnp.zeros((1, Hp), f32).at[:, :H].set(b1.reshape(1, H).astype(f32))
    w2t = (jnp.zeros((8, Hp), f32).at[0, :H]
           .set(w2.reshape(H).astype(f32)).astype(cdt))
    b2p = jnp.asarray(b2, f32).reshape(1)          # SMEM scalar

    if (Bp, dp) != (B, d):
        x = jnp.pad(x, ((0, Bp - B), (0, dp - d)))
    x = x.astype(cdt)

    num_tiles = Bp // TB
    num_k = dp // TK

    # ---- VMEM budget, re-derived so it also fits v7x's 64 MiB/core ----
    vmem_est = (2 * TB * TK * isz          # x, double-buffered
                + 2 * TK * Hp * isz        # w1, double-buffered
                + 2 * Hp * 4               # b1
                + 2 * 8 * Hp * isz         # w2t
                + TB * Hp * 4              # f32 accumulator scratch
                + 2 * TB * 4               # output, double-buffered
                + 3 * TB * Hp * 4)         # h / h^T epilogue temps + margin
    vmem_limit = int(min(48 << 20, max(32 << 20, vmem_est + (8 << 20))))

    out = pl.pallas_call(
        _mlp_probe_kernel,
        out_shape=jax.ShapeDtypeStruct((1, Bp), jnp.float32),
        grid=(num_tiles, num_k),
        in_specs=[
            pl.BlockSpec((TB, TK), lambda i, k: (i, k)),    # x: streamed
            pl.BlockSpec((TK, Hp), lambda i, k: (k, 0)),    # w1: streamed over k
            pl.BlockSpec((1, Hp), lambda i, k: (0, 0)),     # b1: resident
            pl.BlockSpec((8, Hp), lambda i, k: (0, 0)),     # w2^T (padded): resident
            pl.BlockSpec(memory_space=pltpu.MemorySpace.SMEM),  # b2: SMEM scalar
        ],
        out_specs=pl.BlockSpec((1, TB), lambda i, k: (0, i)),
        scratch_shapes=[pltpu.VMEM((TB, Hp), jnp.float32)],
        compiler_params=pltpu.CompilerParams(
            dimension_semantics=("parallel", "arbitrary"),
            vmem_limit_bytes=vmem_limit,
        ),
    )(x, w1p, b1p, w2t, b2p)

    # Free layout plumbing: (1, Bp) -> (B, 1).
    return out[0, :B].reshape(B, 1)


def init_params(d, hidden=100, seed=0):
    """Deterministic init mimicking nn.Linear's U(-1/sqrt(fan_in), 1/sqrt(fan_in))."""
    k = jax.random.PRNGKey(seed)
    k1, k2, k3, k4 = jax.random.split(k, 4)
    bound1 = 1.0 / jnp.sqrt(d)
    bound2 = 1.0 / jnp.sqrt(hidden)
    w1 = jax.random.uniform(k1, (d, hidden), jnp.float32, -bound1, bound1)
    b1 = jax.random.uniform(k2, (hidden,), jnp.float32, -bound1, bound1)
    w2 = jax.random.uniform(k3, (hidden, 1), jnp.float32, -bound2, bound2)
    b2 = jax.random.uniform(k4, (1,), jnp.float32, -bound2, bound2)
    return w1, b1, w2, b2


if __name__ == "__main__":
    B, d = 8, 32
    key = jax.random.PRNGKey(0)
    x = jax.random.normal(key, (B, d), jnp.float32)
    w1, b1, w2, b2 = init_params(d, seed=0)

    # Pure-JAX reference.
    ref = jax.nn.sigmoid(jnp.maximum(x @ w1 + b1, 0.0) @ w2 + b2)

    # Default (bf16-streamed) path: f32 accumulation, bf16 x/w1 rounding only.
    out_bf16 = jax.block_until_ready(mlp_probe_forward(x, w1, b1, w2, b2))
    assert out_bf16.shape == (B, 1)
    assert jnp.allclose(out_bf16, ref, atol=2e-2, rtol=2e-2)

    # f32 path: numerically faithful to the PyTorch module.
    out_f32 = jax.block_until_ready(
        mlp_probe_forward(x, w1, b1, w2, b2, use_bf16=False))
    assert out_f32.shape == (B, 1)
    assert jnp.allclose(out_f32, ref, atol=1e-5, rtol=1e-5)

    print("KERNEL_OK")
</pallas_src>

<mosaic_0001>
module attributes {stable_mosaic.version = 11 : i64} {
  func.func @_mlp_probe_kernel(%arg0: i32, %arg1: i32, %arg2: memref<128x32xbf16, #tpu.memory_space<vmem>>, %arg3: memref<32x128xbf16, #tpu.memory_space<vmem>>, %arg4: memref<1x128xf32, #tpu.memory_space<vmem>>, %arg5: memref<8x128xbf16, #tpu.memory_space<vmem>>, %arg6: memref<1xf32, #tpu.memory_space<smem>>, %arg7: memref<1x128xf32, #tpu.memory_space<vmem>>, %arg8: memref<128x128xf32, #tpu.memory_space<vmem>>) attributes {dimension_semantics = [#tpu.dimension_semantics<parallel>, #tpu.dimension_semantics<arbitrary>], iteration_bounds = array<i64: 1, 1>, scalar_prefetch = 0 : i64, scratch_operands = 1 : i64, tpu.core_type = #tpu.core_type<tc>, window_params = [{transform_indices = @transform_0, window_bounds = array<i64: 128, 32>}, {transform_indices = @transform_1, window_bounds = array<i64: 32, 128>}, {pipeline_mode = #tpu.pipeline_mode<synchronous>, transform_indices = @transform_2, window_bounds = array<i64: 1, 128>}, {pipeline_mode = #tpu.pipeline_mode<synchronous>, transform_indices = @transform_3, window_bounds = array<i64: 8, 128>}, {transform_indices = @transform_4, window_bounds = array<i64: 1>}, {transform_indices = @transform_5, window_bounds = array<i64: 1, 128>}]} {
    %c0_i32 = arith.constant 0 : i32
    %0 = arith.cmpi eq, %arg1, %c0_i32 : i32
    %1 = arith.extui %0 : i1 to i32
    %c0_i32_0 = arith.constant 0 : i32
    %2 = arith.cmpi ne, %1, %c0_i32_0 : i32
    scf.if %2 {
      %cst_10 = arith.constant 0.000000e+00 : f32
      %12 = vector.broadcast %cst_10 : f32 to vector<128x128xf32>
      %c0_11 = arith.constant 0 : index
      %c0_12 = arith.constant 0 : index
      %13 = vector.load %arg8[%c0_11, %c0_12] : memref<128x128xf32, #tpu.memory_space<vmem>>, vector<128x128xf32>
      tpu.vector_store %arg8[%c0_11, %c0_12], %12 {strides = array<i32>} : memref<128x128xf32, #tpu.memory_space<vmem>>, vector<128x128xf32>,
    } else {
    }
    %c0 = arith.constant 0 : index
    %c0_1 = arith.constant 0 : index
    %3 = vector.load %arg8[%c0, %c0_1] : memref<128x128xf32, #tpu.memory_space<vmem>>, vector<128x128xf32>
    %c0_2 = arith.constant 0 : index
    %c0_3 = arith.constant 0 : index
    %4 = vector.load %arg2[%c0_2, %c0_3] : memref<128x32xbf16, #tpu.memory_space<vmem>>, vector<128x32xbf16>
    %c0_4 = arith.constant 0 : index
    %c0_5 = arith.constant 0 : index
    %5 = vector.load %arg3[%c0_4, %c0_5] : memref<32x128xbf16, #tpu.memory_space<vmem>>, vector<32x128xbf16>
    %cst = arith.constant dense<0.000000e+00> : vector<128x128xf32>
    %6 = tpu.matmul %4, %5, %cst {dimension_numbers = #tpu.dot_dimension_numbers<[1], [0], [0], [1], [0, 0, 1, 1], [], []>} : vector<128x32xbf16>, vector<32x128xbf16>, vector<128x128xf32> -> vector<128x128xf32>
    %7 = arith.addf %3, %6 : vector<128x128xf32>
    %c0_6 = arith.constant 0 : index
    %c0_7 = arith.constant 0 : index
    %8 = vector.load %arg8[%c0_6, %c0_7] : memref<128x128xf32, #tpu.memory_space<vmem>>, vector<128x128xf32>
    tpu.vector_store %arg8[%c0_6, %c0_7], %7 {strides = array<i32>} : memref<128x128xf32, #tpu.memory_space<vmem>>, vector<128x128xf32>,
    %c0_i32_8 = arith.constant 0 : i32
    %9 = arith.cmpi eq, %arg1, %c0_i32_8 : i32
    %10 = arith.extui %9 : i1 to i32
    %c0_i32_9 = arith.constant 0 : i32
    %11 = arith.cmpi ne, %10, %c0_i32_9 : i32
    scf.if %11 {
      %c0_10 = arith.constant 0 : index
      %c0_11 = arith.constant 0 : index
      %12 = vector.load %arg8[%c0_10, %c0_11] : memref<128x128xf32, #tpu.memory_space<vmem>>, vector<128x128xf32>
      %c0_12 = arith.constant 0 : index
      %c0_13 = arith.constant 0 : index
      %13 = vector.load %arg4[%c0_12, %c0_13] : memref<1x128xf32, #tpu.memory_space<vmem>>, vector<1x128xf32>
      %14 = vector.broadcast %13 : vector<1x128xf32> to vector<128x128xf32>
      %15 = arith.addf %12, %14 : vector<128x128xf32>
      %cst_14 = arith.constant 0.000000e+00 : f32
      %16 = vector.broadcast %cst_14 : f32 to vector<128x128xf32>
      %17 = arith.maximumf %15, %16 : vector<128x128xf32>
      %18 = arith.truncf %17 : vector<128x128xf32> to vector<128x128xbf16>
      %c0_15 = arith.constant 0 : index
      %c0_16 = arith.constant 0 : index
      %19 = vector.load %arg5[%c0_15, %c0_16] : memref<8x128xbf16, #tpu.memory_space<vmem>>, vector<8x128xbf16>
      %cst_17 = arith.constant dense<0.000000e+00> : vector<8x128xf32>
      %20 = tpu.matmul %19, %18, %cst_17 {dimension_numbers = #tpu.dot_dimension_numbers<[1], [1], [0], [0], [0, 0, 1, 0], [], []>} : vector<8x128xbf16>, vector<128x128xbf16>, vector<8x128xf32> -> vector<8x128xf32>
      %21 = vector.extract_strided_slice %20 {offsets = [0, 0], sizes = [1, 128], strides = [1, 1]} : vector<8x128xf32> to vector<1x128xf32>
      %c0_18 = arith.constant 0 : index
      %22 = memref.load %arg6[%c0_18] : memref<1xf32, #tpu.memory_space<smem>>
      %23 = vector.broadcast %22 : f32 to vector<1x128xf32>
      %24 = arith.addf %21, %23 : vector<1x128xf32>
      %25 = arith.negf %24 : vector<1x128xf32>
      %26 = math.exp %25 : vector<1x128xf32>
      %cst_19 = arith.constant 1.000000e+00 : f32
      %27 = vector.broadcast %cst_19 : f32 to vector<1x128xf32>
      %28 = arith.addf %27, %26 : vector<1x128xf32>
      %29 = arith.divf %27, %28 : vector<1x128xf32>
      %c0_20 = arith.constant 0 : index
      %c0_21 = arith.constant 0 : index
      %30 = vector.load %arg7[%c0_20, %c0_21] : memref<1x128xf32, #tpu.memory_space<vmem>>, vector<1x128xf32>
      tpu.vector_store %arg7[%c0_20, %c0_21], %29 {strides = array<i32>} : memref<1x128xf32, #tpu.memory_space<vmem>>, vector<1x128xf32>,
    } else {
    }
    return
  }
  func.func @transform_0(%arg0: i32, %arg1: i32) -> (i32, i32) {
    %c0_i32 = arith.constant 0 : i32
    return %arg0, %arg1 : i32, i32
  }
  func.func @transform_1(%arg0: i32, %arg1: i32) -> (i32, i32) {
    %c0_i32 = arith.constant 0 : i32
    %c0_i32_0 = arith.constant 0 : i32
    return %arg1, %c0_i32 : i32, i32
  }
  func.func @transform_2(%arg0: i32, %arg1: i32) -> (i32, i32) {
    %c0_i32 = arith.constant 0 : i32
    %c0_i32_0 = arith.constant 0 : i32
    %c0_i32_1 = arith.constant 0 : i32
    return %c0_i32, %c0_i32_0 : i32, i32
  }
  func.func @transform_3(%arg0: i32, %arg1: i32) -> (i32, i32) {
    %c0_i32 = arith.constant 0 : i32
    %c0_i32_0 = arith.constant 0 : i32
    %c0_i32_1 = arith.constant 0 : i32
    return %c0_i32, %c0_i32_0 : i32, i32
  }
  func.func @transform_4(%arg0: i32, %arg1: i32) -> i32 {
    %c0_i32 = arith.constant 0 : i32
    %c0_i32_0 = arith.constant 0 : i32
    return %c0_i32 : i32
  }
  func.func @transform_5(%arg0: i32, %arg1: i32) -> (i32, i32) {
    %c0_i32 = arith.constant 0 : i32
    %c0_i32_0 = arith.constant 0 : i32
    return %c0_i32, %arg0 : i32, i32
  }
}

</mosaic_0001>

<llo_original>
// kernel: tpu_custom_call.1
$region0: #{tpu_custom_call.1}
  #allocation0 [shape = 'u32[]', space=smem, size = 0x4, offset = 0x4, fixed_abs, tag = 'smem constant byte address 0x4 - core index']
  #allocation1 [shape = 'u32[72,128]{1,0:T(1,128)}', space=vmem, size = 0x9000, scoped, tag = 'internal scratch']
  #allocation2 [shape = 'f32[128,128]{1,0:T(8,128)}', space=vmem, size = 0x10000, scoped, tag = 'scratch operand']
  #allocation3 [shape = 'f32[1]{0:T(128)S(6)}', space=smem, size = 0x200, scoped, tag = 'scoped memory for tpu_custom_call.1']
  %s0 = inlined_call_operand.vmem [shape: bf16[128,32], index: 0, kind: input, shape index: {}]
  %s1 = inlined_call_operand.vmem [shape: bf16[32,128], index: 1, kind: input, shape index: {}]
  %s2 = inlined_call_operand.vmem [shape: f32[1,128], index: 2, kind: input, shape index: {}]
  %s3 = inlined_call_operand.vmem [shape: bf16[8,128], index: 3, kind: input, shape index: {}]
  %s4 = inlined_call_operand.<no memory space> [shape: f32[1], index: 4, kind: input, shape index: {}]
  %s5 = inlined_call_operand.hbm [shape: f32[1,128], index: 5, kind: output, shape index: {}]
  %s6 = sld [smem:[#allocation0]]
  $region38: #{tpu_custom_call.1} parent=0
    _
  %s8 = ssub.s32 1, %s6
  %s9 = scalar_select 0, %s8, %s6
  %10 = sst [smem:[#allocation3]] %s4
  $region1: #{tpu_custom_call.1} parent=0
    #allocation4 [shape = 'u8[512]{0}', space=vmem, size = 0x400, scoped, tag = 'output window, operand 0, single buffered']
    #allocation5 [shape = 's32[1]{0}', space=sflag, size = 0x4, scoped, tag = 'scoped memory for tpu_custom_call.1']
    %11 = vsyncpa [#allocation5], 0
    // Predicated region
    $region2: #{tpu_custom_call.1} parent=1 // pred_check
      _
    $region3: #{tpu_custom_call.1} parent=1 // pred_check_branch
      %13 = sbr.rel (0) target = $region5
    $region4: #{tpu_custom_call.1} parent=1 // pred_region
      _
    $region5: #{tpu_custom_call.1} parent=1 // pred_fallthru
      _
    // Predicated region
    $region6: #{tpu_custom_call.1} parent=1 // pred_check
      _
    $region7: #{tpu_custom_call.1} parent=1 // pred_check_branch
      %15 = sbr.rel (0) target = $region9
    $region8: #{tpu_custom_call.1} parent=1 // pred_region
      _
    $region9: #{tpu_custom_call.1} parent=1 // pred_fallthru
      _
    // Predicated region
    $region10: #{tpu_custom_call.1} parent=1 // pred_check
      _
    $region11: #{tpu_custom_call.1} parent=1 // pred_check_branch
      %17 = sbr.rel (0) target = $region13
    $region12: #{tpu_custom_call.1} parent=1 // pred_region
      _
    $region13: #{tpu_custom_call.1} parent=1 // pred_fallthru
      _
    // Predicated region
    $region14: #{tpu_custom_call.1} parent=1 // pred_check
      _
    $region15: #{tpu_custom_call.1} parent=1 // pred_check_branch
      %19 = sbr.rel (0) target = $region17
    $region16: #{tpu_custom_call.1} parent=1 // pred_region
      _
    $region17: #{tpu_custom_call.1} parent=1 // pred_fallthru
      _
    // Predicated region
    $region18: #{tpu_custom_call.1} parent=1 // pred_check
      _
    $region19: #{tpu_custom_call.1} parent=1 // pred_check_branch
      %21 = sbr.rel (0) target = $region21
    $region20: #{tpu_custom_call.1} parent=1 // pred_region
      _
    $region21: #{tpu_custom_call.1} parent=1 // pred_fallthru
      _
    %p23 = scmp.eq.s32.totalorder 0, 0
    // Predicated region
    $region22: #{tpu_custom_call.1} parent=1 // pred_check
      %p24 = pneg %p23
    $region23: #{tpu_custom_call.1} parent=1 // pred_check_branch
      %26 = sbr.rel (%p24) target = $region25
    $region24: #{tpu_custom_call.1} parent=1 // pred_region
      %27 = vst [vmem:[#allocation2] sm:$0xff] 0.0
      %28 = vst [vmem:[#allocation2 + $0x8] sm:$0xff] 0.0
      %29 = vst [vmem:[#allocation2 + $0x10] sm:$0xff] 0.0
      %30 = vst [vmem:[#allocation2 + $0x18] sm:$0xff] 0.0
      %31 = vst [vmem:[#allocation2 + $0x20] sm:$0xff] 0.0
      %32 = vst [vmem:[#allocation2 + $0x28] sm:$0xff] 0.0
      %33 = vst [vmem:[#allocation2 + $0x30] sm:$0xff] 0.0
      %34 = vst [vmem:[#allocation2 + $0x38] sm:$0xff] 0.0
      %35 = vst [vmem:[#allocation2 + $0x40] sm:$0xff] 0.0
      %36 = vst [vmem:[#allocation2 + $0x48] sm:$0xff] 0.0
      %37 = vst [vmem:[#allocation2 + $0x50] sm:$0xff] 0.0
      %38 = vst [vmem:[#allocation2 + $0x58] sm:$0xff] 0.0
      %39 = vst [vmem:[#allocation2 + $0x60] sm:$0xff] 0.0
      %40 = vst [vmem:[#allocation2 + $0x68] sm:$0xff] 0.0
      %41 = vst [vmem:[#allocation2 + $0x70] sm:$0xff] 0.0
      %42 = vst [vmem:[#allocation2 + $0x78] sm:$0xff] 0.0
    $region25: #{tpu_custom_call.1} parent=1 // pred_fallthru
      _
    %v43 = vld [vmem:[#allocation2] sm:$0xff]
    %v44 = vld [vmem:[#allocation2 + $0x8] sm:$0xff]
    %v45 = vld [vmem:[#allocation2 + $0x10] sm:$0xff]
    %v46 = vld [vmem:[#allocation2 + $0x18] sm:$0xff]
    %v47 = vld [vmem:[#allocation2 + $0x20] sm:$0xff]
    %v48 = vld [vmem:[#allocation2 + $0x28] sm:$0xff]
    %v49 = vld [vmem:[#allocation2 + $0x30] sm:$0xff]
    %v50 = vld [vmem:[#allocation2 + $0x38] sm:$0xff]
    %v51 = vld [vmem:[#allocation2 + $0x40] sm:$0xff]
    %v52 = vld [vmem:[#allocation2 + $0x48] sm:$0xff]
    %v53 = vld [vmem:[#allocation2 + $0x50] sm:$0xff]
    %v54 = vld [vmem:[#allocation2 + $0x58] sm:$0xff]
    %v55 = vld [vmem:[#allocation2 + $0x60] sm:$0xff]
    %v56 = vld [vmem:[#allocation2 + $0x68] sm:$0xff]
    %v57 = vld [vmem:[#allocation2 + $0x70] sm:$0xff]
    %v58 = vld [vmem:[#allocation2 + $0x78] sm:$0xff]
    %v59 = vld [vmem:[%s0] sm:$0xf]
    %v60 = vld [vmem:[%s0 + $0x4] sm:$0xf]
    %v61 = vld [vmem:[%s0 + $0x8] sm:$0xf]
    %v62 = vld [vmem:[%s0 + $0xc] sm:$0xf]
    %v63 = vld [vmem:[%s0 + $0x10] sm:$0xf]
    %v64 = vld [vmem:[%s0 + $0x14] sm:$0xf]
    %v65 = vld [vmem:[%s0 + $0x18] sm:$0xf]
    %v66 = vld [vmem:[%s0 + $0x1c] sm:$0xf]
    %v67 = vld [vmem:[%s0 + $0x20] sm:$0xf]
    %v68 = vld [vmem:[%s0 + $0x24] sm:$0xf]
    %v69 = vld [vmem:[%s0 + $0x28] sm:$0xf]
    %v70 = vld [vmem:[%s0 + $0x2c] sm:$0xf]
    %v71 = vld [vmem:[%s0 + $0x30] sm:$0xf]
    %v72 = vld [vmem:[%s0 + $0x34] sm:$0xf]
    %v73 = vld [vmem:[%s0 + $0x38] sm:$0xf]
    %v74 = vld [vmem:[%s0 + $0x3c] sm:$0xf]
    %v75 = vld [vmem:[%s1] sm:$0xf]
    %v76 = vld [vmem:[%s1 + $0x4] sm:$0xf]
    %v77 = vld [vmem:[%s1 + $0x8] sm:$0xf]
    %v78 = vld [vmem:[%s1 + $0xc] sm:$0xf]
    %v95 = vunpack.c.l.b16 %v59
    %v96 = vunpack.c.l.b16 %v60
    %v97 = vunpack.c.l.b16 %v61
    %v98 = vunpack.c.l.b16 %v62
    %v99 = vunpack.c.l.b16 %v63
    %v100 = vunpack.c.l.b16 %v64
    %v101 = vunpack.c.l.b16 %v65
    %v102 = vunpack.c.l.b16 %v66
    %v103 = vunpack.c.l.b16 %v67
    %v104 = vunpack.c.l.b16 %v68
    %v105 = vunpack.c.l.b16 %v69
    %v106 = vunpack.c.l.b16 %v70
    %v107 = vunpack.c.l.b16 %v71
    %v108 = vunpack.c.l.b16 %v72
    %v109 = vunpack.c.l.b16 %v73
    %v110 = vunpack.c.l.b16 %v74
    %v111 = vpack.c.b16 %v96, %v95
    %v112 = vpack.c.b16 %v98, %v97
    %v113 = vpack.c.b16 %v100, %v99
    %v114 = vpack.c.b16 %v102, %v101
    %v115 = vpack.c.b16 %v104, %v103
    %v116 = vpack.c.b16 %v106, %v105
    %v117 = vpack.c.b16 %v108, %v107
    %v118 = vpack.c.b16 %v110, %v109
    %v123 = vunpack.c.l.b16 %v75
    %v124 = vunpack.c.l.b16 %v76
    %v125 = vunpack.c.l.b16 %v77
    %v126 = vunpack.c.l.b16 %v78
    %v127 = vpack.c.b16 %v124, %v123
    %v128 = vpack.c.b16 %v126, %v125
    %vm131 = vcmask 261120
    %v133 = vsel %vm131, %v111, 0
    %v136 = vsel %vm131, %v112, 0
    %v139 = vsel %vm131, %v113, 0
    %v142 = vsel %vm131, %v114, 0
    %v145 = vsel %vm131, %v115, 0
    %v148 = vsel %vm131, %v116, 0
    %v151 = vsel %vm131, %v117, 0
    %v154 = vsel %vm131, %v118, 0
    %156 = vmatpush.bf16.msra.mxu0 0
    %157 = vmatpush.bf16.msra.mxu0 0
    %158 = vmatpush.bf16.msra.mxu0 0
    %159 = vmatpush.bf16.msra.mxu0 0
    %160 = vmatpush.bf16.msra.mxu0 0
    %161 = vmatpush.bf16.msra.mxu0 0
    %162 = vmatpush.bf16.msra.mxu0 %v128
    %163 = vmatpush.bf16.msra.mxu0 %v127
    %164 = vmatmul.bf16.gmra.mxu0 %v133
    %v165 = vpop.f32.mrf.mxu0
    %v166 = vadd.f32 0.0, %v165
    %v167 = vpop.f32.mrf.mxu0
    %v168 = vadd.f32 0.0, %v167
    %169 = vmatmul.bf16.gmra.mxu0 %v136
    %v170 = vpop.f32.mrf.mxu0
    %v171 = vadd.f32 0.0, %v170
    %v172 = vpop.f32.mrf.mxu0
    %v173 = vadd.f32 0.0, %v172
    %174 = vmatmul.bf16.gmra.mxu0 %v139
    %v175 = vpop.f32.mrf.mxu0
    %v176 = vadd.f32 0.0, %v175
    %v177 = vpop.f32.mrf.mxu0
    %v178 = vadd.f32 0.0, %v177
    %179 = vmatmul.bf16.gmra.mxu0 %v142
    %v180 = vpop.f32.mrf.mxu0
    %v181 = vadd.f32 0.0, %v180
    %v182 = vpop.f32.mrf.mxu0
    %v183 = vadd.f32 0.0, %v182
    %184 = vmatmul.bf16.gmra.mxu0 %v145
    %v185 = vpop.f32.mrf.mxu0
    %v186 = vadd.f32 0.0, %v185
    %v187 = vpop.f32.mrf.mxu0
    %v188 = vadd.f32 0.0, %v187
    %189 = vmatmul.bf16.gmra.mxu0 %v148
    %v190 = vpop.f32.mrf.mxu0
    %v191 = vadd.f32 0.0, %v190
    %v192 = vpop.f32.mrf.mxu0
    %v193 = vadd.f32 0.0, %v192
    %194 = vmatmul.bf16.gmra.mxu0 %v151
    %v195 = vpop.f32.mrf.mxu0
    %v196 = vadd.f32 0.0, %v195
    %v197 = vpop.f32.mrf.mxu0
    %v198 = vadd.f32 0.0, %v197
    %199 = vmatmul.bf16.gmra.mxu0 %v154
    %v200 = vpop.f32.mrf.mxu0
    %v201 = vadd.f32 0.0, %v200
    %v202 = vpop.f32.mrf.mxu0
    %v203 = vadd.f32 0.0, %v202
    %204 = vdwg.mxu0
    %v205 = vadd.f32 %v43, %v166
    %v206 = vadd.f32 %v44, %v168
    %v207 = vadd.f32 %v45, %v171
    %v208 = vadd.f32 %v46, %v173
    %v209 = vadd.f32 %v47, %v176
    %v210 = vadd.f32 %v48, %v178
    %v211 = vadd.f32 %v49, %v181
    %v212 = vadd.f32 %v50, %v183
    %v213 = vadd.f32 %v51, %v186
    %v214 = vadd.f32 %v52, %v188
    %v215 = vadd.f32 %v53, %v191
    %v216 = vadd.f32 %v54, %v193
    %v217 = vadd.f32 %v55, %v196
    %v218 = vadd.f32 %v56, %v198
    %v219 = vadd.f32 %v57, %v201
    %v220 = vadd.f32 %v58, %v203
    %221 = vst [vmem:[#allocation2] sm:$0xff] %v205
    %222 = vst [vmem:[#allocation2 + $0x8] sm:$0xff] %v206
    %223 = vst [vmem:[#allocation2 + $0x10] sm:$0xff] %v207
    %224 = vst [vmem:[#allocation2 + $0x18] sm:$0xff] %v208
    %225 = vst [vmem:[#allocation2 + $0x20] sm:$0xff] %v209
    %226 = vst [vmem:[#allocation2 + $0x28] sm:$0xff] %v210
    %227 = vst [vmem:[#allocation2 + $0x30] sm:$0xff] %v211
    %228 = vst [vmem:[#allocation2 + $0x38] sm:$0xff] %v212
    %229 = vst [vmem:[#allocation2 + $0x40] sm:$0xff] %v213
    %230 = vst [vmem:[#allocation2 + $0x48] sm:$0xff] %v214
    %231 = vst [vmem:[#allocation2 + $0x50] sm:$0xff] %v215
    %232 = vst [vmem:[#allocation2 + $0x58] sm:$0xff] %v216
    %233 = vst [vmem:[#allocation2 + $0x60] sm:$0xff] %v217
    %234 = vst [vmem:[#allocation2 + $0x68] sm:$0xff] %v218
    %235 = vst [vmem:[#allocation2 + $0x70] sm:$0xff] %v219
    %236 = vst [vmem:[#allocation2 + $0x78] sm:$0xff] %v220
    // Predicated region
    $region26: #{tpu_custom_call.1} parent=1 // pred_check
      %p237 = pneg %p23
    $region27: #{tpu_custom_call.1} parent=1 // pred_check_branch
      %239 = sbr.rel (%p237) target = $region29
    $region28: #{tpu_custom_call.1} parent=1 // pred_region
      %v240 = vld [vmem:[#allocation2] sm:$0xff]
      %v241 = vld [vmem:[#allocation2 + $0x8] sm:$0xff]
      %v242 = vld [vmem:[#allocation2 + $0x10] sm:$0xff]
      %v243 = vld [vmem:[#allocation2 + $0x18] sm:$0xff]
      %v244 = vld [vmem:[#allocation2 + $0x20] sm:$0xff]
      %v245 = vld [vmem:[#allocation2 + $0x28] sm:$0xff]
      %v246 = vld [vmem:[#allocation2 + $0x30] sm:$0xff]
      %v247 = vld [vmem:[#allocation2 + $0x38] sm:$0xff]
      %v248 = vld [vmem:[#allocation2 + $0x40] sm:$0xff]
      %v249 = vld [vmem:[#allocation2 + $0x48] sm:$0xff]
      %v250 = vld [vmem:[#allocation2 + $0x50] sm:$0xff]
      %v251 = vld [vmem:[#allocation2 + $0x58] sm:$0xff]
      %v252 = vld [vmem:[#allocation2 + $0x60] sm:$0xff]
      %v253 = vld [vmem:[#allocation2 + $0x68] sm:$0xff]
      %v254 = vld [vmem:[#allocation2 + $0x70] sm:$0xff]
      %v255 = vld [vmem:[#allocation2 + $0x78] sm:$0xff]
      %v256 = vld [vmem:[%s2] sm:$0x1]
      %v258 = vperm.slane %v256, 0
      %v260 = vadd.f32 %v240, %v258
      %v261 = vadd.f32 %v241, %v258
      %v262 = vadd.f32 %v242, %v258
      %v263 = vadd.f32 %v243, %v258
      %v264 = vadd.f32 %v244, %v258
      %v265 = vadd.f32 %v245, %v258
      %v266 = vadd.f32 %v246, %v258
      %v267 = vadd.f32 %v247, %v258
      %v268 = vadd.f32 %v248, %v258
      %v269 = vadd.f32 %v249, %v258
      %v270 = vadd.f32 %v250, %v258
      %v271 = vadd.f32 %v251, %v258
      %v272 = vadd.f32 %v252, %v258
      %v273 = vadd.f32 %v253, %v258
      %v274 = vadd.f32 %v254, %v258
      %v275 = vadd.f32 %v255, %v258
      %v276 = vmax.f32 %v260, 0.0
      %v277 = vmax.f32 %v261, 0.0
      %v278 = vmax.f32 %v262, 0.0
      %v279 = vmax.f32 %v263, 0.0
      %v280 = vmax.f32 %v264, 0.0
      %v281 = vmax.f32 %v265, 0.0
      %v282 = vmax.f32 %v266, 0.0
      %v283 = vmax.f32 %v267, 0.0
      %v284 = vmax.f32 %v268, 0.0
      %v285 = vmax.f32 %v269, 0.0
      %v286 = vmax.f32 %v270, 0.0
      %v287 = vmax.f32 %v271, 0.0
      %v288 = vmax.f32 %v272, 0.0
      %v289 = vmax.f32 %v273, 0.0
      %v290 = vmax.f32 %v274, 0.0
      %v291 = vmax.f32 %v275, 0.0
      %v292 = vpack.c.bf16 %v277, %v276
      %v293 = vpack.c.bf16 %v279, %v278
      %v294 = vpack.c.bf16 %v281, %v280
      %v295 = vpack.c.bf16 %v283, %v282
      %v296 = vpack.c.bf16 %v285, %v284
      %v297 = vpack.c.bf16 %v287, %v286
      %v298 = vpack.c.bf16 %v289, %v288
      %v299 = vpack.c.bf16 %v291, %v290
      %v300 = vld [vmem:[%s3] sm:$0xf]
      %301 = vmatpush.bf16.xpose.msra.mxu0 %v299
      %302 = vmatpush.bf16.xpose.msra.mxu0 %v298
      %303 = vmatpush.bf16.xpose.msra.mxu0 %v297
      %304 = vmatpush.bf16.xpose.msra.mxu0 %v296
      %305 = vmatpush.bf16.xpose.msra.mxu0 %v295
      %306 = vmatpush.bf16.xpose.msra.mxu0 %v294
      %307 = vmatpush.bf16.xpose.msra.mxu0 %v293
      %308 = vmatpush.bf16.xpose.msra.mxu0 %v292
      %309 = vmatmul.bf16.gmra.mxu0 %v300
      %v310 = vpop.f32.mrf.mxu0
      %v311 = vadd.f32 0.0, %v310
      %v312 = vpop.f32.mrf.mxu0
      %313 = vdwg.mxu0
      %s314 = sld [smem:[#allocation3]]
      %v315 = vstv %s314
      %v316 = vadd.f32 %v311, %v315
      %v317 = vxor.u32 %v316, 2147483648
      %v318 = vmul.f32 %v317, 1.442695
      %v319 = vpow.pop %v318
      %v320 = vadd.f32 %v319, 1.0
      %v321 = vrcp.pop %v320
      %v322 = vmul.f32 %v320, %v321
      %v323 = vsub.f32 1.0, %v322
      %v324 = vmul.f32 %v321, %v323
      %v325 = vadd.f32 %v321, %v324
      %vm326 = vweird.f32 %v320
      %vm327 = vweird.f32 %v321
      %vm328 = vmor %vm326, %vm327
      %v329 = vsel %vm328, %v321, %v325
      %v330 = vand.u32 2147483647, %v320
      %vm331 = vcmp.eq.f32.partialorder %v330, 8.507059e+37
      %v332 = vand.u32 %v320, 2147483648
      %v333 = vor.u32 1.1754944e-38, %v332
      %v334 = vsel %vm331, %v333, %v329
      %v335 = vmul.f32 1.0, %v334
      %336 = vst [vmem:[#allocation4] sm:$0x1] %v335
    $region29: #{tpu_custom_call.1} parent=1 // pred_fallthru
      _
    // Predicated region
    $region30: #{tpu_custom_call.1} parent=1 // pred_check
      _
    $region31: #{tpu_custom_call.1} parent=1 // pred_check_branch
      %338 = sbr.rel (0) target = $region33
    $region32: #{tpu_custom_call.1} parent=1 // pred_region
      %340 = vsyncadd [#allocation5], 0
      %s342 = sshll.u32 [#allocation4], 4
      %s343 = int_to_ptr.vmem [resolvable:$true] %s342
      %s344 = sshll.u32 %s5, 4
      %s345 = int_to_ptr.hbm [resolvable:$true] %s344
      %347 = dma.vmem_to_hbm [thread:$0]  %s343, 16, %s345, [#allocation5]
    $region33: #{tpu_custom_call.1} parent=1 // pred_fallthru
      _
    // Predicated region
    $region34: #{tpu_custom_call.1} parent=1 // pred_check
      _
    $region35: #{tpu_custom_call.1} parent=1 // pred_check_branch
      %349 = sbr.rel (0) target = $region37
    $region36: #{tpu_custom_call.1} parent=1 // pred_region
      %351 = dma.done [#allocation5], 16
    $region37: #{tpu_custom_call.1} parent=1 // pred_fallthru
      _
    %352 = vsyncpa [#allocation5], 1

</llo_original>
